<compile_context>
chip_gen: v7x
topology: tpu7x:2x2x1
jax: 0.10.0
libtpu: 0.0.40
codegen_flags: <defaults>
</compile_context>

<pallas_src>
import jax
import jax.numpy as jnp
from jax.experimental import pallas as pl
from jax.experimental.pallas import tpu as pltpu


def _round_up(x, m):
    return ((x + m - 1) // m) * m


def _focus_conv_kernel(xt_ref, w_ref, shift_ref, o_ref):
    # xt_ref:   (K, tile_m)  transposed space-to-depth activations (lane = spatial)
    # w_ref:    (N, K)       1x1 conv weight with BN scale folded in
    # shift_ref:(N, 1)       folded BN shift = beta - mean * scale
    # o_ref:    (N, tile_m)  lane-dense output block
    y = jnp.dot(w_ref[...], xt_ref[...], preferred_element_type=jnp.float32)
    y = y + shift_ref[...]                                   # BatchNorm (eval-mode affine)
    o_ref[...] = (y * jax.nn.sigmoid(y)).astype(o_ref.dtype)  # SiLU


def focus_forward(x, conv_w, bn_gamma, bn_beta, bn_mean, bn_var,
                  eps=1e-5, tile_m=2048):
    """x: (B, C, H, W) float32, NCHW.  conv_w: (Cout, 4C, 1, 1).  Returns NCHW."""
    B, C, H, W = x.shape
    N = conv_w.shape[0]
    K = 4 * C
    H2, W2 = H // 2, W // 2
    M = B * H2 * W2

    # --- space-to-depth in channel-major layout (glue, fused by XLA) ---
    # (C, B, H, W) -> slices -> concat on channel axis -> (4C, B, H2, W2) -> (K, M)
    xt = jnp.transpose(x, (1, 0, 2, 3))
    tl = xt[..., ::2, ::2]
    bl = xt[..., 1::2, ::2]
    tr = xt[..., ::2, 1::2]
    br = xt[..., 1::2, 1::2]
    xk = jnp.concatenate([tl, bl, tr, br], axis=0).reshape(K, M)
    xk = xk.astype(jnp.float32)

    # --- fold BN into the 1x1 conv ---
    scale = bn_gamma / jnp.sqrt(bn_var + eps)                       # (N,)
    w_fold = (conv_w.reshape(N, K) * scale[:, None]).astype(jnp.float32)   # (N, K)
    shift = (bn_beta - bn_mean * scale).reshape(N, 1).astype(jnp.float32)  # (N, 1)

    # --- tiling: lane axis (M) padded to a multiple of the tile ---
    tile = min(tile_m, _round_up(M, 128))
    M_pad = _round_up(M, tile)
    if M_pad != M:
        xk = jnp.pad(xk, ((0, 0), (0, M_pad - M)))

    out_t = pl.pallas_call(
        _focus_conv_kernel,
        out_shape=jax.ShapeDtypeStruct((N, M_pad), jnp.float32),
        grid_spec=pltpu.PrefetchScalarGridSpec(
            num_scalar_prefetch=0,
            grid=(M_pad // tile,),
            in_specs=[
                pl.BlockSpec((K, tile), lambda i: (0, i)),   # activations (lane-dense)
                pl.BlockSpec((N, K), lambda i: (0, 0)),      # folded weight (resident)
                pl.BlockSpec((N, 1), lambda i: (0, 0)),      # BN shift (resident)
            ],
            out_specs=pl.BlockSpec((N, tile), lambda i: (0, i)),
        ),
        compiler_params=pltpu.CompilerParams(
            dimension_semantics=("parallel",)),
    )(xk, w_fold, shift)

    # (N, M_pad) -> drop padding -> (B, Cout, H/2, W/2)
    out_t = out_t[:, :M]
    return jnp.transpose(out_t.reshape(N, B, H2, W2), (1, 0, 2, 3))


def _reference(x, conv_w, bn_gamma, bn_beta, bn_mean, bn_var, eps=1e-5):
    # Pure-JAX reference for sanity checking (eval-mode BN).
    tl = x[..., ::2, ::2]
    bl = x[..., 1::2, ::2]
    tr = x[..., ::2, 1::2]
    br = x[..., 1::2, 1::2]
    xc = jnp.concatenate([tl, bl, tr, br], axis=1)
    y = jnp.einsum("bchw,oc->bohw", xc, conv_w[:, :, 0, 0])
    scale = bn_gamma / jnp.sqrt(bn_var + eps)
    shift = bn_beta - bn_mean * scale
    y = y * scale[None, :, None, None] + shift[None, :, None, None]
    return y * jax.nn.sigmoid(y)


if __name__ == "__main__":
    key = jax.random.PRNGKey(0)
    k_x, k_w, k_g, k_b, k_m, k_v = jax.random.split(key, 6)

    B, C, H, W = 2, 4, 16, 16
    Cout = 8
    K = 4 * C  # channels after space-to-depth

    x = jax.random.normal(k_x, (B, C, H, W), dtype=jnp.float32)

    # Conv2d(4C, Cout, 1, 1, bias=False) + BatchNorm2d(Cout) eval-mode params.
    conv_w = jax.random.normal(k_w, (Cout, K, 1, 1), dtype=jnp.float32) * 0.1
    bn_gamma = 1.0 + 0.1 * jax.random.normal(k_g, (Cout,), dtype=jnp.float32)
    bn_beta = 0.1 * jax.random.normal(k_b, (Cout,), dtype=jnp.float32)
    bn_mean = 0.1 * jax.random.normal(k_m, (Cout,), dtype=jnp.float32)
    bn_var = jnp.abs(1.0 + 0.1 * jax.random.normal(k_v, (Cout,), dtype=jnp.float32))

    out = focus_forward(x, conv_w, bn_gamma, bn_beta, bn_mean, bn_var)
    out = jax.block_until_ready(out)

    ref = _reference(x, conv_w, bn_gamma, bn_beta, bn_mean, bn_var)
    assert out.shape == (B, Cout, H // 2, W // 2), out.shape
    assert jnp.allclose(out, ref, atol=1e-5, rtol=1e-5), "mismatch vs reference"

    print("KERNEL_OK")
</pallas_src>

<mosaic_0001>
module attributes {stable_mosaic.version = 11 : i64} {
  func.func @_focus_conv_kernel(%arg0: i32, %arg1: memref<16x128xf32, #tpu.memory_space<vmem>>, %arg2: memref<8x16xf32, #tpu.memory_space<vmem>>, %arg3: memref<8x1xf32, #tpu.memory_space<vmem>>, %arg4: memref<8x128xf32, #tpu.memory_space<vmem>>) attributes {dimension_semantics = [#tpu.dimension_semantics<parallel>], iteration_bounds = array<i64: 1>, scalar_prefetch = 0 : i64, scratch_operands = 0 : i64, tpu.core_type = #tpu.core_type<tc>, window_params = [{transform_indices = @transform_0, window_bounds = array<i64: 16, 128>}, {pipeline_mode = #tpu.pipeline_mode<synchronous>, transform_indices = @transform_1, window_bounds = array<i64: 8, 16>}, {pipeline_mode = #tpu.pipeline_mode<synchronous>, transform_indices = @transform_2, window_bounds = array<i64: 8, 1>}, {transform_indices = @transform_3, window_bounds = array<i64: 8, 128>}]} {
    %c0 = arith.constant 0 : index
    %c0_0 = arith.constant 0 : index
    %0 = vector.load %arg2[%c0, %c0_0] : memref<8x16xf32, #tpu.memory_space<vmem>>, vector<8x16xf32>
    %c0_1 = arith.constant 0 : index
    %c0_2 = arith.constant 0 : index
    %1 = vector.load %arg1[%c0_1, %c0_2] : memref<16x128xf32, #tpu.memory_space<vmem>>, vector<16x128xf32>
    %cst = arith.constant dense<0.000000e+00> : vector<8x128xf32>
    %2 = tpu.matmul %0, %1, %cst {dimension_numbers = #tpu.dot_dimension_numbers<[1], [0], [0], [1], [0, 0, 1, 1], [], []>} : vector<8x16xf32>, vector<16x128xf32>, vector<8x128xf32> -> vector<8x128xf32>
    %c0_3 = arith.constant 0 : index
    %c0_4 = arith.constant 0 : index
    %3 = vector.load %arg3[%c0_3, %c0_4] : memref<8x1xf32, #tpu.memory_space<vmem>>, vector<8x1xf32>
    %4 = vector.broadcast %3 : vector<8x1xf32> to vector<8x128xf32>
    %5 = arith.addf %2, %4 : vector<8x128xf32>
    %6 = arith.negf %5 : vector<8x128xf32>
    %7 = math.exp %6 : vector<8x128xf32>
    %cst_5 = arith.constant 1.000000e+00 : f32
    %8 = vector.broadcast %cst_5 : f32 to vector<8x128xf32>
    %9 = arith.addf %8, %7 : vector<8x128xf32>
    %10 = arith.divf %8, %9 : vector<8x128xf32>
    %11 = arith.mulf %5, %10 : vector<8x128xf32>
    %c0_6 = arith.constant 0 : index
    %c0_7 = arith.constant 0 : index
    %12 = vector.load %arg4[%c0_6, %c0_7] : memref<8x128xf32, #tpu.memory_space<vmem>>, vector<8x128xf32>
    tpu.vector_store %arg4[%c0_6, %c0_7], %11 {strides = array<i32>} : memref<8x128xf32, #tpu.memory_space<vmem>>, vector<8x128xf32>,
    return
  }
  func.func @transform_0(%arg0: i32) -> (i32, i32) {
    %c0_i32 = arith.constant 0 : i32
    %c0_i32_0 = arith.constant 0 : i32
    return %c0_i32, %arg0 : i32, i32
  }
  func.func @transform_1(%arg0: i32) -> (i32, i32) {
    %c0_i32 = arith.constant 0 : i32
    %c0_i32_0 = arith.constant 0 : i32
    %c0_i32_1 = arith.constant 0 : i32
    return %c0_i32, %c0_i32_0 : i32, i32
  }
  func.func @transform_2(%arg0: i32) -> (i32, i32) {
    %c0_i32 = arith.constant 0 : i32
    %c0_i32_0 = arith.constant 0 : i32
    %c0_i32_1 = arith.constant 0 : i32
    return %c0_i32, %c0_i32_0 : i32, i32
  }
  func.func @transform_3(%arg0: i32) -> (i32, i32) {
    %c0_i32 = arith.constant 0 : i32
    %c0_i32_0 = arith.constant 0 : i32
    return %c0_i32, %arg0 : i32, i32
  }
}

</mosaic_0001>

<llo_original>
// kernel: tpu_custom_call.1
$region0: #{tpu_custom_call.1}
  #allocation0 [shape = 'u32[]', space=smem, size = 0x4, offset = 0x4, fixed_abs, tag = 'smem constant byte address 0x4 - core index']
  #allocation1 [shape = 'u32[144,128]{1,0:T(1,128)}', space=vmem, size = 0x12000, scoped, tag = 'internal scratch']
  %s0 = inlined_call_operand.hbm [shape: f32[16,128], index: 0, kind: input, shape index: {}]
  %s1 = inlined_call_operand.vmem [shape: f32[8,16], index: 1, kind: input, shape index: {}]
  %s2 = inlined_call_operand.vmem [shape: f32[8,1], index: 2, kind: input, shape index: {}]
  %s3 = inlined_call_operand.hbm [shape: f32[8,128], index: 3, kind: output, shape index: {}]
  %s4 = sld [smem:[#allocation0]]
  $region26: #{tpu_custom_call.1} parent=0
    _
  %s6 = ssub.s32 1, %s4
  %s7 = scalar_select 0, %s6, %s4
  $region1: #{tpu_custom_call.1} parent=0
    #allocation2 [shape = 'u8[8192]{0}', space=vmem, size = 0x2000, scoped, tag = 'input window, operand 0, single buffered']
    #allocation3 [shape = 's32[1]{0}', space=sflag, size = 0x4, scoped, tag = 'scoped memory for tpu_custom_call.1']
    #allocation4 [shape = 's32[1]{0}', space=sflag, size = 0x4, scoped, tag = 'scoped memory for tpu_custom_call.1']
    #allocation5 [shape = 'u8[4096]{0}', space=vmem, size = 0x1000, scoped, tag = 'output window, operand 0, single buffered']
    %8 = vsyncpa [#allocation3], 0
    %9 = vsyncpa [#allocation4], 0
    // Predicated region
    $region2: #{tpu_custom_call.1} parent=1 // pred_check
      _
    $region3: #{tpu_custom_call.1} parent=1 // pred_check_branch
      %11 = sbr.rel (0) target = $region5
    $region4: #{tpu_custom_call.1} parent=1 // pred_region
      %s13 = ssub.s32 256, 256
      %14 = vsyncadd [#allocation3], %s13
      %s15 = sshll.u32 [#allocation2], 4
      %s16 = int_to_ptr.vmem [resolvable:$true] %s15
      %21 = dma.hbm_to_vmem [thread:$0]  %s0, 256, %s16, [#allocation3], 128, 128, 8
    $region5: #{tpu_custom_call.1} parent=1 // pred_fallthru
      _
    // Predicated region
    $region6: #{tpu_custom_call.1} parent=1 // pred_check
      _
    $region7: #{tpu_custom_call.1} parent=1 // pred_check_branch
      %23 = sbr.rel (0) target = $region9
    $region8: #{tpu_custom_call.1} parent=1 // pred_region
      _
    $region9: #{tpu_custom_call.1} parent=1 // pred_fallthru
      _
    // Predicated region
    $region10: #{tpu_custom_call.1} parent=1 // pred_check
      _
    $region11: #{tpu_custom_call.1} parent=1 // pred_check_branch
      %25 = sbr.rel (0) target = $region13
    $region12: #{tpu_custom_call.1} parent=1 // pred_region
      _
    $region13: #{tpu_custom_call.1} parent=1 // pred_fallthru
      _
    // Predicated region
    $region14: #{tpu_custom_call.1} parent=1 // pred_check
      _
    $region15: #{tpu_custom_call.1} parent=1 // pred_check_branch
      %27 = sbr.rel (0) target = $region17
    $region16: #{tpu_custom_call.1} parent=1 // pred_region
      %28 = dma.done [#allocation3], 256
    $region17: #{tpu_custom_call.1} parent=1 // pred_fallthru
      _
    %v29 = vld [vmem:[%s1] sm:$0xff]
    %v30 = vld [vmem:[#allocation2] sm:$0xff]
    %v31 = vld [vmem:[#allocation2 + $0x8] sm:$0xff]
    %v32 = vld [vmem:[%s2] sm:$0xff]
    %34 = vset.pattern.permute.xlu0 0
    %35 = vperm.xlu0 %34, %v32
    %v36 = vpop.permute.xlu0 %35
    %vm38 = vcmask 130048
    %v40 = vsel %vm38, %v29, 0
    %42 = vmatprep.subr.mxu0 0.0
    %43 = vmatpush1.msra.mxu0 %v30
    %44 = vmatprep.subr.mxu0 0.0
    %45 = vmatpush1.msra.mxu0 %v31
    %46 = vmatprep.subr.mxu0 0.0
    %47 = vmatpush1.msra.mxu0 0.0
    %48 = vmatprep.subr.mxu0 0.0
    %49 = vmatpush1.msra.mxu0 0.0
    %50 = vmatprep.subr.mxu0 0.0
    %51 = vmatpush1.msra.mxu0 0.0
    %52 = vmatprep.subr.mxu0 0.0
    %53 = vmatpush1.msra.mxu0 0.0
    %54 = vmatprep.subr.mxu0 0.0
    %55 = vmatpush1.msra.mxu0 0.0
    %56 = vmatprep.subr.mxu0 0.0
    %57 = vmatpush1.msra.mxu0 0.0
    %58 = vmatprep.subr.mxu0 0.0
    %59 = vmatpush1.msra.mxu0 0.0
    %60 = vmatprep.subr.mxu0 0.0
    %61 = vmatpush1.msra.mxu0 0.0
    %62 = vmatprep.subr.mxu0 0.0
    %63 = vmatpush1.msra.mxu0 0.0
    %64 = vmatprep.subr.mxu0 0.0
    %65 = vmatpush1.msra.mxu0 0.0
    %66 = vmatprep.subr.mxu0 0.0
    %67 = vmatpush1.msra.mxu0 0.0
    %68 = vmatprep.subr.mxu0 0.0
    %69 = vmatpush1.msra.mxu0 0.0
    %70 = vmatprep.subr.mxu0 0.0
    %71 = vmatpush1.msra.mxu0 0.0
    %72 = vmatprep.subr.mxu0 0.0
    %73 = vmatpush1.msra.mxu0 0.0
    %74 = vmatprep.subr.mxu0 0.0
    %75 = vmatpush1.msra.mxu0 0.0
    %76 = vmatprep.subr.mxu0 0.0
    %77 = vmatpush1.msra.mxu0 0.0
    %78 = vmatprep.subr.mxu0 0.0
    %79 = vmatpush1.msra.mxu0 0.0
    %80 = vmatprep.subr.mxu0 0.0
    %81 = vmatpush1.msra.mxu0 0.0
    %82 = vmatprep.subr.mxu0 0.0
    %83 = vmatpush1.msra.mxu0 0.0
    %84 = vmatprep.subr.mxu0 0.0
    %85 = vmatpush1.msra.mxu0 0.0
    %86 = vmatprep.subr.mxu0 0.0
    %87 = vmatpush1.msra.mxu0 0.0
    %88 = vmatprep.subr.mxu0 0.0
    %89 = vmatpush1.msra.mxu0 0.0
    %90 = vmatprep.subr.mxu0 0.0
    %91 = vmatpush1.msra.mxu0 0.0
    %92 = vmatprep.subr.mxu0 0.0
    %93 = vmatpush1.msra.mxu0 0.0
    %94 = vmatprep.subr.mxu0 0.0
    %95 = vmatpush1.msra.mxu0 0.0
    %96 = vmatprep.subr.mxu0 0.0
    %97 = vmatpush1.msra.mxu0 0.0
    %98 = vmatprep.subr.mxu0 0.0
    %99 = vmatpush1.msra.mxu0 0.0
    %100 = vmatprep.subr.mxu0 0.0
    %101 = vmatpush1.msra.mxu0 0.0
    %102 = vmatprep.subr.mxu0 0.0
    %103 = vmatpush1.msra.mxu0 0.0
    %104 = vmatprep.subr.mxu0 0.0
    %105 = vmatpush1.msra.mxu0 0.0
    %106 = vmatprep.mubr.f32.mxu0 0.0
    %107 = vmatmul.mubr.f32.gmra.mrb[0].mxu0 %v40
    %v108 = vpop.f32.mrb[0].mxu0
    %v109 = vadd.f32 %v36, %v108
    %v110 = vpop.f32.mrb[0].mxu0
    %111 = vdwg.mxu0
    %v112 = vxor.u32 %v109, 2147483648
    %v113 = vmul.f32 %v112, 1.442695
    %v114 = vpow.pop %v113
    %v115 = vadd.f32 %v114, 1.0
    %v116 = vrcp.pop %v115
    %v117 = vmul.f32 1.0, %v116
    %v118 = vmul.f32 %v109, %v117
    %119 = vst [vmem:[#allocation5] sm:$0xff] %v118
    // Predicated region
    $region18: #{tpu_custom_call.1} parent=1 // pred_check
      _
    $region19: #{tpu_custom_call.1} parent=1 // pred_check_branch
      %121 = sbr.rel (0) target = $region21
    $region20: #{tpu_custom_call.1} parent=1 // pred_region
      %s123 = ssub.s32 128, 128
      %124 = vsyncadd [#allocation4], %s123
      %s126 = sshll.u32 [#allocation5], 4
      %s127 = int_to_ptr.vmem [resolvable:$true] %s126
      %129 = dma.vmem_to_hbm [thread:$0]  %s127, 128, %s3, [#allocation4]
    $region21: #{tpu_custom_call.1} parent=1 // pred_fallthru
      _
    // Predicated region
    $region22: #{tpu_custom_call.1} parent=1 // pred_check
      _
    $region23: #{tpu_custom_call.1} parent=1 // pred_check_branch
      %131 = sbr.rel (0) target = $region25
    $region24: #{tpu_custom_call.1} parent=1 // pred_region
      %132 = dma.done [#allocation4], 128
    $region25: #{tpu_custom_call.1} parent=1 // pred_fallthru
      _
    %133 = vsyncpa [#allocation3], 1
    %134 = vsyncpa [#allocation4], 1

</llo_original>
